<compile_context>
chip_gen: v7x
topology: tpu7x:2x2x1
jax: 0.10.0
libtpu: 0.0.40
codegen_flags: <defaults>
</compile_context>

<pallas_src>
import functools

import jax
import jax.numpy as jnp
from jax.experimental import pallas as pl
from jax.experimental.pallas import tpu as pltpu


def _round_up(x, m):
    return (x + m - 1) // m * m


def joints_mse_kernel(pred_ref, gt_ref, w_ref, out_ref, acc_ref, *, inv_hw):
    """One (row-tile, HW-tile) grid step.

    pred_ref / gt_ref : (TR, THW) tiles in native dtype
    w_ref             : (TR, 1)   f32 per-row target weight (resident across k)
    out_ref           : (TR, 1)   f32 per-row loss (written at last k)
    acc_ref           : (TR, 1)   f32 VMEM scratch accumulator
    """
    k = pl.program_id(1)

    @pl.when(k == 0)
    def _():
        acc_ref[...] = jnp.zeros_like(acc_ref)

    d = pred_ref[...].astype(jnp.float32) - gt_ref[...].astype(jnp.float32)
    acc_ref[...] += jnp.sum(d * d, axis=1, keepdims=True)  # XLU lane reduce

    @pl.when(k == pl.num_programs(1) - 1)
    def _():
        w = w_ref[...]
        out_ref[...] = (acc_ref[...] * (w * w) * (0.5 * inv_hw)).astype(
            out_ref.dtype
        )


def joints_mse_loss(output, target, target_weight, use_target_weight=True):
    """output, target: (B, J, H, W); target_weight: (B, J, 1). Returns (B, J)."""
    B, J, H, W = output.shape
    HW = H * W
    R = B * J

    # Keep native dtype (no HBM-side f32 upcast); kernel casts tiles to f32.
    pred = output.reshape(R, HW)
    gt = target.reshape(R, HW)
    if use_target_weight:
        tw = target_weight.reshape(R, 1).astype(jnp.float32)
    else:
        # TODO(synk): the PyTorch `else` branch references an undefined
        # `heatmap_pred` (bug in the source); implement the obvious intent,
        # i.e. the unweighted loss == weights of 1.
        tw = jnp.ones((R, 1), jnp.float32)

    itemsize = jnp.dtype(pred.dtype).itemsize

    # --- tile sizing (VMEM-aware, portable across v5e/v6e/v7x) -------------
    THW = min(_round_up(HW, 128), 4096)                  # lane-axis tile
    target_tile_bytes = 4 * 1024 * 1024                  # ~4 MiB per input tile
    rows_budget = max(8, (target_tile_bytes // (THW * itemsize)) // 8 * 8)
    TR = min(_round_up(R, 8), rows_budget)               # row-axis tile

    R_pad = _round_up(R, TR)
    HW_pad = _round_up(HW, THW)

    # Zero-pad so the grid divides evenly; padded entries contribute 0 to the
    # sum of squared diffs, and the mean divides by the true HW.
    if (R_pad, HW_pad) != (R, HW):
        pred = jnp.pad(pred, ((0, R_pad - R), (0, HW_pad - HW)))
        gt = jnp.pad(gt, ((0, R_pad - R), (0, HW_pad - HW)))
    if R_pad != R:
        tw = jnp.pad(tw, ((0, R_pad - R), (0, 0)))

    grid = (R_pad // TR, HW_pad // THW)

    # Explicit VMEM budget: 2 inputs x 2 pipeline buffers x tile + small slack.
    tile_bytes = TR * THW * itemsize
    vmem_limit = 2 * 2 * tile_bytes + 16 * TR * 4 + (4 << 20)
    vmem_limit = int(min(max(vmem_limit, 16 << 20), 40 << 20))

    kernel = functools.partial(joints_mse_kernel, inv_hw=1.0 / HW)

    out = pl.pallas_call(
        kernel,
        out_shape=jax.ShapeDtypeStruct((R_pad, 1), jnp.float32),
        grid_spec=pltpu.PrefetchScalarGridSpec(
            num_scalar_prefetch=0,
            grid=grid,
            in_specs=[
                pl.BlockSpec((TR, THW), lambda i, k: (i, k)),
                pl.BlockSpec((TR, THW), lambda i, k: (i, k)),
                pl.BlockSpec((TR, 1), lambda i, k: (i, 0)),
            ],
            out_specs=pl.BlockSpec((TR, 1), lambda i, k: (i, 0)),
            scratch_shapes=[pltpu.VMEM((TR, 1), jnp.float32)],
        ),
        compiler_params=pltpu.CompilerParams(
            dimension_semantics=("parallel", "arbitrary"),
            vmem_limit_bytes=vmem_limit,
        ),
    )(pred, gt, tw)

    return out[:R, 0].reshape(B, J)


def joints_mse_loss_ref(output, target, target_weight, use_target_weight=True):
    B, J = output.shape[0], output.shape[1]
    pred = output.reshape(B, J, -1).astype(jnp.float32)
    gt = target.reshape(B, J, -1).astype(jnp.float32)
    if use_target_weight:
        tw = target_weight.reshape(B, J, 1).astype(jnp.float32)
    else:
        tw = jnp.ones((B, J, 1), jnp.float32)
    loss = 0.5 * (pred * tw - gt * tw) ** 2
    return loss.mean(axis=2)


if __name__ == "__main__":
    # --- primary test: small shapes from the spec, f32 ---------------------
    B, J, H, W = 2, 4, 16, 16
    k1, k2, k3 = jax.random.split(jax.random.PRNGKey(0), 3)
    output = jax.random.normal(k1, (B, J, H, W), dtype=jnp.float32)
    target = jax.random.normal(k2, (B, J, H, W), dtype=jnp.float32)
    target_weight = jax.random.uniform(k3, (B, J, 1), dtype=jnp.float32)

    loss = jax.block_until_ready(
        joints_mse_loss(output, target, target_weight, use_target_weight=True)
    )
    ref = joints_mse_loss_ref(output, target, target_weight, True)
    assert loss.shape == (B, J)
    assert jnp.allclose(loss, ref, atol=1e-5, rtol=1e-5), (loss, ref)

    loss_nw = jax.block_until_ready(
        joints_mse_loss(output, target, target_weight, use_target_weight=False)
    )
    ref_nw = joints_mse_loss_ref(output, target, target_weight, False)
    assert jnp.allclose(loss_nw, ref_nw, atol=1e-5, rtol=1e-5), (loss_nw, ref_nw)

    # --- second test: bf16 heatmaps, non-aligned shapes, padded rows -------
    B2, J2, H2, W2 = 3, 17, 48, 64  # R=51 -> pads to 56; HW=3072
    k4, k5, k6 = jax.random.split(jax.random.PRNGKey(1), 3)
    out2 = jax.random.normal(k4, (B2, J2, H2, W2), dtype=jnp.bfloat16)
    tgt2 = jax.random.normal(k5, (B2, J2, H2, W2), dtype=jnp.bfloat16)
    tw2 = jax.random.uniform(k6, (B2, J2, 1), dtype=jnp.float32)

    loss2 = jax.block_until_ready(
        joints_mse_loss(out2, tgt2, tw2, use_target_weight=True)
    )
    ref2 = joints_mse_loss_ref(out2, tgt2, tw2, True)
    assert loss2.shape == (B2, J2)
    assert jnp.allclose(loss2, ref2, atol=1e-4, rtol=1e-4), (loss2, ref2)

    print("KERNEL_OK")
</pallas_src>

<mosaic_0001>
module attributes {stable_mosaic.version = 11 : i64} {
  func.func @joints_mse_kernel(%arg0: i32, %arg1: i32, %arg2: memref<8x256xf32, #tpu.memory_space<vmem>>, %arg3: memref<8x256xf32, #tpu.memory_space<vmem>>, %arg4: memref<8x1xf32, #tpu.memory_space<vmem>>, %arg5: memref<8x1xf32, #tpu.memory_space<vmem>>, %arg6: memref<8x1xf32, #tpu.memory_space<vmem>>) attributes {dimension_semantics = [#tpu.dimension_semantics<parallel>, #tpu.dimension_semantics<arbitrary>], iteration_bounds = array<i64: 1, 1>, scalar_prefetch = 0 : i64, scratch_operands = 1 : i64, tpu.core_type = #tpu.core_type<tc>, window_params = [{transform_indices = @transform_0, window_bounds = array<i64: 8, 256>}, {transform_indices = @transform_1, window_bounds = array<i64: 8, 256>}, {transform_indices = @transform_2, window_bounds = array<i64: 8, 1>}, {transform_indices = @transform_3, window_bounds = array<i64: 8, 1>}]} {
    %c0_i32 = arith.constant 0 : i32
    %0 = arith.cmpi eq, %arg1, %c0_i32 : i32
    %1 = arith.extui %0 : i1 to i32
    %c0_i32_0 = arith.constant 0 : i32
    %2 = arith.cmpi ne, %1, %c0_i32_0 : i32
    scf.if %2 {
      %cst_10 = arith.constant 0.000000e+00 : f32
      %15 = vector.broadcast %cst_10 : f32 to vector<8x1xf32>
      %c0_11 = arith.constant 0 : index
      %c0_12 = arith.constant 0 : index
      %16 = vector.load %arg6[%c0_11, %c0_12] : memref<8x1xf32, #tpu.memory_space<vmem>>, vector<8x1xf32>
      tpu.vector_store %arg6[%c0_11, %c0_12], %15 {strides = array<i32>} : memref<8x1xf32, #tpu.memory_space<vmem>>, vector<8x1xf32>,
    } else {
    }
    %c0 = arith.constant 0 : index
    %c0_1 = arith.constant 0 : index
    %3 = vector.load %arg2[%c0, %c0_1] : memref<8x256xf32, #tpu.memory_space<vmem>>, vector<8x256xf32>
    %c0_2 = arith.constant 0 : index
    %c0_3 = arith.constant 0 : index
    %4 = vector.load %arg3[%c0_2, %c0_3] : memref<8x256xf32, #tpu.memory_space<vmem>>, vector<8x256xf32>
    %5 = arith.subf %3, %4 : vector<8x256xf32>
    %c0_4 = arith.constant 0 : index
    %c0_5 = arith.constant 0 : index
    %6 = vector.load %arg6[%c0_4, %c0_5] : memref<8x1xf32, #tpu.memory_space<vmem>>, vector<8x1xf32>
    %7 = arith.mulf %5, %5 : vector<8x256xf32>
    %cst = arith.constant dense<0.000000e+00> : vector<8xf32>
    %8 = vector.multi_reduction <add>, %7, %cst [1] : vector<8x256xf32> to vector<8xf32>
    %9 = vector.shape_cast %8 : vector<8xf32> to vector<8x1xf32>
    %10 = arith.addf %6, %9 : vector<8x1xf32>
    %c0_6 = arith.constant 0 : index
    %c0_7 = arith.constant 0 : index
    %11 = vector.load %arg6[%c0_6, %c0_7] : memref<8x1xf32, #tpu.memory_space<vmem>>, vector<8x1xf32>
    tpu.vector_store %arg6[%c0_6, %c0_7], %10 {strides = array<i32>} : memref<8x1xf32, #tpu.memory_space<vmem>>, vector<8x1xf32>,
    %c0_i32_8 = arith.constant 0 : i32
    %12 = arith.cmpi eq, %arg1, %c0_i32_8 : i32
    %13 = arith.extui %12 : i1 to i32
    %c0_i32_9 = arith.constant 0 : i32
    %14 = arith.cmpi ne, %13, %c0_i32_9 : i32
    scf.if %14 {
      %c0_10 = arith.constant 0 : index
      %c0_11 = arith.constant 0 : index
      %15 = vector.load %arg4[%c0_10, %c0_11] : memref<8x1xf32, #tpu.memory_space<vmem>>, vector<8x1xf32>
      %c0_12 = arith.constant 0 : index
      %c0_13 = arith.constant 0 : index
      %16 = vector.load %arg6[%c0_12, %c0_13] : memref<8x1xf32, #tpu.memory_space<vmem>>, vector<8x1xf32>
      %17 = arith.mulf %15, %15 : vector<8x1xf32>
      %18 = arith.mulf %16, %17 : vector<8x1xf32>
      %cst_14 = arith.constant 0.001953125 : f32
      %19 = vector.broadcast %cst_14 : f32 to vector<8x1xf32>
      %20 = arith.mulf %18, %19 : vector<8x1xf32>
      %c0_15 = arith.constant 0 : index
      %c0_16 = arith.constant 0 : index
      %21 = vector.load %arg5[%c0_15, %c0_16] : memref<8x1xf32, #tpu.memory_space<vmem>>, vector<8x1xf32>
      tpu.vector_store %arg5[%c0_15, %c0_16], %20 {strides = array<i32>} : memref<8x1xf32, #tpu.memory_space<vmem>>, vector<8x1xf32>,
    } else {
    }
    return
  }
  func.func @transform_0(%arg0: i32, %arg1: i32) -> (i32, i32) {
    %c0_i32 = arith.constant 0 : i32
    return %arg0, %arg1 : i32, i32
  }
  func.func @transform_1(%arg0: i32, %arg1: i32) -> (i32, i32) {
    %c0_i32 = arith.constant 0 : i32
    return %arg0, %arg1 : i32, i32
  }
  func.func @transform_2(%arg0: i32, %arg1: i32) -> (i32, i32) {
    %c0_i32 = arith.constant 0 : i32
    %c0_i32_0 = arith.constant 0 : i32
    return %arg0, %c0_i32 : i32, i32
  }
  func.func @transform_3(%arg0: i32, %arg1: i32) -> (i32, i32) {
    %c0_i32 = arith.constant 0 : i32
    %c0_i32_0 = arith.constant 0 : i32
    return %arg0, %c0_i32 : i32, i32
  }
}

</mosaic_0001>

<llo_original>
// kernel: tpu_custom_call.1
$region0: #{tpu_custom_call.1}
  #allocation0 [shape = 'u32[]', space=smem, size = 0x4, offset = 0x4, fixed_abs, tag = 'smem constant byte address 0x4 - core index']
  #allocation1 [shape = 'u32[144,128]{1,0:T(1,128)}', space=vmem, size = 0x12000, scoped, tag = 'internal scratch']
  #allocation2 [shape = 'f32[8,1]{1,0:T(8,128)}', space=vmem, size = 0x1000, scoped, tag = 'scratch operand']
  %s0 = inlined_call_operand.hbm [shape: f32[8,256], index: 0, kind: input, shape index: {}]
  %s1 = inlined_call_operand.hbm [shape: f32[8,256], index: 1, kind: input, shape index: {}]
  %s2 = inlined_call_operand.vmem [shape: f32[8,1], index: 2, kind: input, shape index: {}]
  %s3 = inlined_call_operand.vmem [shape: f32[8,1], index: 3, kind: output, shape index: {}]
  %s4 = sld [smem:[#allocation0]]
  $region38: #{tpu_custom_call.1} parent=0
    _
  %s6 = ssub.s32 1, %s4
  %s7 = scalar_select 0, %s6, %s4
  $region1: #{tpu_custom_call.1} parent=0
    #allocation3 [shape = 'u8[8192]{0}', space=vmem, size = 0x2000, scoped, tag = 'input window, operand 0, single buffered']
    #allocation4 [shape = 's32[1]{0}', space=sflag, size = 0x4, scoped, tag = 'scoped memory for tpu_custom_call.1']
    #allocation5 [shape = 'u8[8192]{0}', space=vmem, size = 0x2000, scoped, tag = 'input window, operand 1, single buffered']
    #allocation6 [shape = 's32[1]{0}', space=sflag, size = 0x4, scoped, tag = 'scoped memory for tpu_custom_call.1']
    %8 = vsyncpa [#allocation4], 0
    %9 = vsyncpa [#allocation6], 0
    // Predicated region
    $region2: #{tpu_custom_call.1} parent=1 // pred_check
      _
    $region3: #{tpu_custom_call.1} parent=1 // pred_check_branch
      %11 = sbr.rel (0) target = $region5
    $region4: #{tpu_custom_call.1} parent=1 // pred_region
      %s13 = ssub.s32 256, 256
      %14 = vsyncadd [#allocation4], %s13
      %s16 = sshll.u32 [#allocation3], 4
      %s17 = int_to_ptr.vmem [resolvable:$true] %s16
      %19 = dma.hbm_to_vmem [thread:$0]  %s0, 256, %s17, [#allocation4]
    $region5: #{tpu_custom_call.1} parent=1 // pred_fallthru
      _
    // Predicated region
    $region6: #{tpu_custom_call.1} parent=1 // pred_check
      _
    $region7: #{tpu_custom_call.1} parent=1 // pred_check_branch
      %21 = sbr.rel (0) target = $region9
    $region8: #{tpu_custom_call.1} parent=1 // pred_region
      %s23 = ssub.s32 256, 256
      %24 = vsyncadd [#allocation6], %s23
      %s26 = sshll.u32 [#allocation5], 4
      %s27 = int_to_ptr.vmem [resolvable:$true] %s26
      %29 = dma.hbm_to_vmem [thread:$0]  %s1, 256, %s27, [#allocation6]
    $region9: #{tpu_custom_call.1} parent=1 // pred_fallthru
      _
    // Predicated region
    $region10: #{tpu_custom_call.1} parent=1 // pred_check
      _
    $region11: #{tpu_custom_call.1} parent=1 // pred_check_branch
      %31 = sbr.rel (0) target = $region13
    $region12: #{tpu_custom_call.1} parent=1 // pred_region
      _
    $region13: #{tpu_custom_call.1} parent=1 // pred_fallthru
      _
    // Predicated region
    $region14: #{tpu_custom_call.1} parent=1 // pred_check
      _
    $region15: #{tpu_custom_call.1} parent=1 // pred_check_branch
      %33 = sbr.rel (0) target = $region17
    $region16: #{tpu_custom_call.1} parent=1 // pred_region
      %34 = dma.done [#allocation4], 256
    $region17: #{tpu_custom_call.1} parent=1 // pred_fallthru
      _
    // Predicated region
    $region18: #{tpu_custom_call.1} parent=1 // pred_check
      _
    $region19: #{tpu_custom_call.1} parent=1 // pred_check_branch
      %36 = sbr.rel (0) target = $region21
    $region20: #{tpu_custom_call.1} parent=1 // pred_region
      %37 = dma.done [#allocation6], 256
    $region21: #{tpu_custom_call.1} parent=1 // pred_fallthru
      _
    %p38 = scmp.eq.s32.totalorder 0, 0
    // Predicated region
    $region22: #{tpu_custom_call.1} parent=1 // pred_check
      %p39 = pneg %p38
    $region23: #{tpu_custom_call.1} parent=1 // pred_check_branch
      %41 = sbr.rel (%p39) target = $region25
    $region24: #{tpu_custom_call.1} parent=1 // pred_region
      %vm42 = vcmask 7168
      %43 = vst.msk [vmem:[#allocation2] sm:$0xff] %vm42, 0.0
    $region25: #{tpu_custom_call.1} parent=1 // pred_fallthru
      _
    %v44 = vld [vmem:[#allocation3] sm:$0xff]
    %v45 = vld [vmem:[#allocation3 + $0x8] sm:$0xff]
    %v46 = vld [vmem:[#allocation5] sm:$0xff]
    %v47 = vld [vmem:[#allocation5 + $0x8] sm:$0xff]
    %v48 = vsub.f32 %v44, %v46
    %v49 = vsub.f32 %v45, %v47
    %v50 = vld [vmem:[#allocation2] sm:$0xff]
    %v51 = vmul.f32 %v48, %v48
    %v52 = vmul.f32 %v49, %v49
    %v53 = vadd.f32 %v51, %v52
    %54 = vadd.xlane.f32.xlu0 %v53
    %v55 = vpop.xlane.xlu0 %54
    %v56 = vadd.f32 %v50, %v55
    %vm57 = vcmask 7168
    %58 = vst.msk [vmem:[#allocation2] sm:$0xff] %vm57, %v56
    // Predicated region
    $region26: #{tpu_custom_call.1} parent=1 // pred_check
      %p59 = pneg %p38
    $region27: #{tpu_custom_call.1} parent=1 // pred_check_branch
      %61 = sbr.rel (%p59) target = $region29
    $region28: #{tpu_custom_call.1} parent=1 // pred_region
      %v62 = vld [vmem:[%s2] sm:$0xff]
      %v63 = vld [vmem:[#allocation2] sm:$0xff]
      %v64 = vmul.f32 %v62, %v62
      %v65 = vmul.f32 %v63, %v64
      %v66 = vmul.f32 %v65, 0.001953125
      %67 = vst.msk [vmem:[%s3] sm:$0xff] %vm57, %v66
    $region29: #{tpu_custom_call.1} parent=1 // pred_fallthru
      _
    // Predicated region
    $region30: #{tpu_custom_call.1} parent=1 // pred_check
      _
    $region31: #{tpu_custom_call.1} parent=1 // pred_check_branch
      %69 = sbr.rel (0) target = $region33
    $region32: #{tpu_custom_call.1} parent=1 // pred_region
      _
    $region33: #{tpu_custom_call.1} parent=1 // pred_fallthru
      _
    // Predicated region
    $region34: #{tpu_custom_call.1} parent=1 // pred_check
      _
    $region35: #{tpu_custom_call.1} parent=1 // pred_check_branch
      %71 = sbr.rel (0) target = $region37
    $region36: #{tpu_custom_call.1} parent=1 // pred_region
      _
    $region37: #{tpu_custom_call.1} parent=1 // pred_fallthru
      _
    %72 = vsyncpa [#allocation4], 1
    %73 = vsyncpa [#allocation6], 1

</llo_original>
